<compile_context>
chip_gen: v5e
topology: v5e:2x2
jax: 0.10.0
libtpu: 0.0.40
codegen_flags: <defaults>
</compile_context>

<pallas_src>
import math

import jax
import jax.numpy as jnp
from jax.experimental import pallas as pl
from jax.experimental.pallas import tpu as pltpu


def _cdiv(a, m):
    return -(-a // m)


def _rup(a, m):
    return _cdiv(a, m) * m


def _block_spec(block_shape, index_map, buffer_count=None):
    """BlockSpec helper: request an explicit pipeline depth when the API supports it."""
    if buffer_count is not None:
        try:
            return pl.BlockSpec(block_shape, index_map,
                                pipeline_mode=pl.Buffered(buffer_count))
        except (TypeError, AttributeError):
            pass
    return pl.BlockSpec(block_shape, index_map)


# --------------------------------------------------------------------------------------
# Kernel 1: SigmoidFeatureModule (elementwise, tiny next to the matmul)
# --------------------------------------------------------------------------------------
def _sigmoid_feature_kernel(x_ref, slopes_ref, biases_ref, wnorm_ref, feats_ref):
    x = x_ref[...]                                # (tile_b, tile_g) f32
    sl = slopes_ref[...]                          # (C, tile_g) f32
    bi = biases_ref[...]
    wn = wnorm_ref[...]                           # softmax already applied in the wrapper
    acc = jnp.zeros_like(x)
    for c in range(sl.shape[0]):                  # small C -> fully unrolled, lane-dense VPU/EUP ops
        acc = acc + wn[c:c + 1] * jax.nn.sigmoid(sl[c:c + 1] * x + bi[c:c + 1])
    feats_ref[...] = acc.astype(feats_ref.dtype)  # store bf16 (matmul dtype)


# --------------------------------------------------------------------------------------
# Kernel 2: LinearInteractionNetwork + softplus head
#   grid = (b, i, k): batch tile, output-gene tile, input-gene (reduction) tile
# --------------------------------------------------------------------------------------
def _interaction_kernel(feats_ref, wt_ref, base_ref, o_ref, acc_ref):
    k = pl.program_id(2)

    @pl.when(k == 0)
    def _init():
        acc_ref[...] = jnp.zeros_like(acc_ref)

    tile_k = wt_ref.shape[2]
    start = pl.multiple_of(k * tile_k, 128)
    f = feats_ref[:, pl.ds(start, tile_k)]        # (tile_b, tile_k), already matmul dtype
    acc_ref[...] += jnp.dot(f, wt_ref[0, 0], preferred_element_type=jnp.float32)

    @pl.when(k == pl.num_programs(2) - 1)
    def _finalize():
        o_ref[...] = jax.nn.softplus(acc_ref[...] + base_ref[...]).astype(o_ref.dtype)


# --------------------------------------------------------------------------------------
# Wrapper
# --------------------------------------------------------------------------------------
def regulatory_network_forward(spliced, slopes, biases, weights,
                               interaction_matrix, atac_mask, base_transcription,
                               *, tile_b=None, tile_n=None, tile_k=None,
                               matmul_dtype=jnp.bfloat16):
    """spliced: (B, G); slopes/biases/weights: (G, C); W/mask: (G, G); base: (G,)."""
    B, G = spliced.shape
    C = slopes.shape[1]

    # ---- parameter-only precompute, hoisted out of the kernels ----------------------
    wn_t = jax.nn.softmax(weights.astype(jnp.float32), axis=-1).T                 # (C, G)
    slopes_t = slopes.astype(jnp.float32).T                                       # (C, G)
    biases_t = biases.astype(jnp.float32).T                                       # (C, G)
    # pre-masked + pre-transposed interaction matrix: out = feats @ (W*mask)^T
    wt = (interaction_matrix.astype(jnp.float32) * atac_mask.astype(jnp.float32)).T  # (G, G)
    base_2d = base_transcription.astype(jnp.float32).reshape(1, G)
    x = spliced.astype(jnp.float32)

    # ---- tile selection --------------------------------------------------------------
    g128 = _rup(G, 128)

    def pick_gene_tile():
        for t in (1024, 512, 256, 128):
            if t <= g128:
                return t
        return 128

    if tile_n is None:
        tile_n = pick_gene_tile()
    if tile_k is None:
        tile_k = pick_gene_tile()
    assert tile_n % 128 == 0 and tile_k % 128 == 0, "gene tiles must be multiples of 128"
    Gp = _rup(G, math.lcm(tile_n, tile_k))

    # batch tile: as big as possible so the dominant W^T HBM stream is read only once
    if tile_b is None:
        tile_b = min(_rup(B, 16), 512)
    assert tile_b % 16 == 0, "batch tile must be a multiple of 16 (bf16 sublane packing)"

    mm_bytes = jnp.dtype(matmul_dtype).itemsize

    def vmem_estimate(tb):
        return (tb * Gp * mm_bytes                 # feats slab (single-buffered)
                + 2 * tile_k * tile_n * mm_bytes   # streamed W^T tiles (double-buffered)
                + 2 * 8 * tile_n * 4               # base row (sublane-padded)
                + 2 * tb * tile_n * 4              # output tiles
                + tb * tile_n * 4)                 # f32 accumulator

    try:
        vmem_cap = int(pltpu.get_tpu_info().vmem_capacity_bytes)
    except Exception:
        vmem_cap = 64 * 1024 * 1024                # conservative (v7x-sized)
    vmem_budget = int(0.70 * vmem_cap)
    while vmem_estimate(tile_b) > vmem_budget and tile_b > 16:
        tile_b = max(16, tile_b // 2)

    Bp = _rup(B, tile_b)
    n_b, n_i, n_k = Bp // tile_b, Gp // tile_n, Gp // tile_k
    vmem_limit = min(max(int(1.5 * vmem_estimate(tile_b)) + (2 << 20), 16 << 20),
                     int(0.9 * vmem_cap))

    # ---- zero-pad to tiled shapes (zero K rows of W^T neutralize any padding) --------
    def pad2(a, r, c_):
        pr, pc = r - a.shape[0], c_ - a.shape[1]
        return a if (pr == 0 and pc == 0) else jnp.pad(a, ((0, pr), (0, pc)))

    x_p = pad2(x, Bp, Gp)
    sl_p = pad2(slopes_t, C, Gp)
    bi_p = pad2(biases_t, C, Gp)
    wn_p = pad2(wn_t, C, Gp)
    wt_p = pad2(wt, Gp, Gp).astype(matmul_dtype)           # bf16 halves the dominant HBM stream
    base_p = pad2(base_2d, 1, Gp)

    # block-contiguous W^T: each streamed (tile_k, tile_n) tile is one contiguous DMA
    wt_blocked = wt_p.reshape(n_k, tile_k, n_i, tile_n).transpose(0, 2, 1, 3)

    # ---- stage 1: sigmoid features (elementwise) -------------------------------------
    feats = pl.pallas_call(
        _sigmoid_feature_kernel,
        out_shape=jax.ShapeDtypeStruct((Bp, Gp), matmul_dtype),
        grid=(n_b, n_k),
        in_specs=[
            pl.BlockSpec((tile_b, tile_k), lambda b, g: (b, g)),   # x
            pl.BlockSpec((C, tile_k), lambda b, g: (0, g)),        # slopes^T
            pl.BlockSpec((C, tile_k), lambda b, g: (0, g)),        # biases^T
            pl.BlockSpec((C, tile_k), lambda b, g: (0, g)),        # softmax(weights)^T
        ],
        out_specs=pl.BlockSpec((tile_b, tile_k), lambda b, g: (b, g)),
        compiler_params=pltpu.CompilerParams(
            dimension_semantics=("parallel", "parallel")),
    )(x_p, sl_p, bi_p, wn_p)

    # ---- stage 2: feats @ (W*mask)^T + base -> softplus -------------------------------
    out = pl.pallas_call(
        _interaction_kernel,
        out_shape=jax.ShapeDtypeStruct((Bp, Gp), jnp.float32),
        grid=(n_b, n_i, n_k),
        in_specs=[
            # bf16 feats slab for the current batch tile; changes only with b -> 1 buffer
            _block_spec((tile_b, Gp), lambda b, i, k: (b, 0), buffer_count=1),
            # block-contiguous W^T tiles, streamed (double-buffered by default)
            pl.BlockSpec((1, 1, tile_k, tile_n), lambda b, i, k: (k, i, 0, 0)),
            # base transcription row for this output tile
            pl.BlockSpec((1, tile_n), lambda b, i, k: (0, i)),
        ],
        out_specs=pl.BlockSpec((tile_b, tile_n), lambda b, i, k: (b, i)),
        scratch_shapes=[pltpu.VMEM((tile_b, tile_n), jnp.float32)],
        compiler_params=pltpu.CompilerParams(
            dimension_semantics=("parallel", "parallel", "arbitrary"),
            vmem_limit_bytes=vmem_limit),
    )(feats, wt_blocked, base_p)

    return out[:B, :G]


# --------------------------------------------------------------------------------------
# Parameter init + references
# --------------------------------------------------------------------------------------
def init_params(key, n_genes, n_components, interaction_strength=1.0):
    """Deterministic parameter init matching the PyTorch module's __init__."""
    k1, k2, k3 = jax.random.split(key, 3)
    slopes = 1.0 + 0.1 * jax.random.normal(k1, (n_genes, n_components), jnp.float32)
    biases = 0.0 + 0.1 * jax.random.normal(k2, (n_genes, n_components), jnp.float32)
    weights = jnp.ones((n_genes, n_components), jnp.float32) / n_components
    bound = jnp.sqrt(6.0 / (n_genes + n_genes))          # xavier_uniform on (G, G)
    interaction_matrix = jax.random.uniform(
        k3, (n_genes, n_genes), jnp.float32, minval=-bound, maxval=bound) * interaction_strength
    atac_mask = jnp.ones((n_genes, n_genes), jnp.float32)   # default buffer (all accessible)
    base_transcription = jnp.ones((n_genes,), jnp.float32) * 0.1
    return slopes, biases, weights, interaction_matrix, atac_mask, base_transcription


def reference_forward(spliced, slopes, biases, weights, W, mask, base):
    """Pure-JAX f32 reference mirroring the torch forward."""
    x = spliced[..., None]                                       # (B, G, 1)
    sig = jax.nn.sigmoid(slopes[None] * x + biases[None])        # (B, G, C)
    wn = jax.nn.softmax(weights, axis=-1)                        # (G, C)
    feats = jnp.sum(wn[None] * sig, axis=-1)                     # (B, G)
    inter = (W * mask) @ feats.T                                 # (G, B)
    return jax.nn.softplus(inter.T + base[None, :])              # (B, G)


def reference_forward_matched(spliced, slopes, biases, weights, W, mask, base,
                              matmul_dtype=jnp.bfloat16):
    """Reference applying the same matmul-precision casts as the kernel path."""
    x = spliced[..., None]
    sig = jax.nn.sigmoid(slopes[None] * x + biases[None])
    wn = jax.nn.softmax(weights, axis=-1)
    feats = jnp.sum(wn[None] * sig, axis=-1)
    wt = (W * mask).T.astype(matmul_dtype)
    inter = jnp.dot(feats.astype(matmul_dtype), wt, preferred_element_type=jnp.float32)
    return jax.nn.softplus(inter + base[None, :])


if __name__ == "__main__":
    B, G, C = 8, 256, 8
    key = jax.random.PRNGKey(0)
    k_params, k_x = jax.random.split(key)

    params = init_params(k_params, n_genes=G, n_components=C, interaction_strength=1.0)
    spliced = jax.random.uniform(k_x, (B, G), jnp.float32, minval=0.0, maxval=5.0)

    # Forced 128-wide gene tiles -> grid (1, 2, 2): exercises K accumulation, N tiling,
    # init/finalize pl.when paths and the block-contiguous W layout.
    out = regulatory_network_forward(spliced, *params, tile_n=128, tile_k=128)
    out = jax.block_until_ready(out)
    assert out.shape == (B, G)

    ref_matched = reference_forward_matched(spliced, *params, matmul_dtype=jnp.bfloat16)
    assert jnp.allclose(out, ref_matched, atol=5e-3, rtol=5e-3), \
        "mismatch vs matched-precision reference"

    ref_f32 = reference_forward(spliced, *params)
    assert jnp.allclose(out, ref_f32, atol=5e-2, rtol=5e-2), "mismatch vs f32 reference"

    # Default (largest-tile) config: single-step grid path.
    out_def = jax.block_until_ready(regulatory_network_forward(spliced, *params))
    assert jnp.allclose(out_def, ref_matched, atol=5e-3, rtol=5e-3), \
        "default-tiling mismatch vs matched-precision reference"

    print("KERNEL_OK")
</pallas_src>

<mosaic_0001>
module attributes {stable_mosaic.version = 11 : i64} {
  func.func @_sigmoid_feature_kernel(%arg0: i32, %arg1: i32, %arg2: memref<16x128xf32, #tpu.memory_space<vmem>>, %arg3: memref<8x128xf32, #tpu.memory_space<vmem>>, %arg4: memref<8x128xf32, #tpu.memory_space<vmem>>, %arg5: memref<8x128xf32, #tpu.memory_space<vmem>>, %arg6: memref<16x128xbf16, #tpu.memory_space<vmem>>) attributes {dimension_semantics = [#tpu.dimension_semantics<parallel>, #tpu.dimension_semantics<parallel>], iteration_bounds = array<i64: 1, 2>, scalar_prefetch = 0 : i64, scratch_operands = 0 : i64, tpu.core_type = #tpu.core_type<tc>, window_params = [{transform_indices = @transform_0, window_bounds = array<i64: 16, 128>}, {transform_indices = @transform_1, window_bounds = array<i64: 8, 128>}, {transform_indices = @transform_2, window_bounds = array<i64: 8, 128>}, {transform_indices = @transform_3, window_bounds = array<i64: 8, 128>}, {transform_indices = @transform_4, window_bounds = array<i64: 16, 128>}]} {
    %c0 = arith.constant 0 : index
    %c0_0 = arith.constant 0 : index
    %0 = vector.load %arg2[%c0, %c0_0] : memref<16x128xf32, #tpu.memory_space<vmem>>, vector<16x128xf32>
    %c0_1 = arith.constant 0 : index
    %c0_2 = arith.constant 0 : index
    %1 = vector.load %arg3[%c0_1, %c0_2] : memref<8x128xf32, #tpu.memory_space<vmem>>, vector<8x128xf32>
    %c0_3 = arith.constant 0 : index
    %c0_4 = arith.constant 0 : index
    %2 = vector.load %arg4[%c0_3, %c0_4] : memref<8x128xf32, #tpu.memory_space<vmem>>, vector<8x128xf32>
    %c0_5 = arith.constant 0 : index
    %c0_6 = arith.constant 0 : index
    %3 = vector.load %arg5[%c0_5, %c0_6] : memref<8x128xf32, #tpu.memory_space<vmem>>, vector<8x128xf32>
    %cst = arith.constant 0.000000e+00 : f32
    %4 = vector.broadcast %cst : f32 to vector<16x128xf32>
    %5 = vector.extract_strided_slice %3 {offsets = [0, 0], sizes = [1, 128], strides = [1, 1]} : vector<8x128xf32> to vector<1x128xf32>
    %6 = vector.extract_strided_slice %1 {offsets = [0, 0], sizes = [1, 128], strides = [1, 1]} : vector<8x128xf32> to vector<1x128xf32>
    %7 = vector.broadcast %6 : vector<1x128xf32> to vector<16x128xf32>
    %8 = arith.mulf %7, %0 : vector<16x128xf32>
    %9 = vector.extract_strided_slice %2 {offsets = [0, 0], sizes = [1, 128], strides = [1, 1]} : vector<8x128xf32> to vector<1x128xf32>
    %10 = vector.broadcast %9 : vector<1x128xf32> to vector<16x128xf32>
    %11 = arith.addf %8, %10 : vector<16x128xf32>
    %12 = arith.negf %11 : vector<16x128xf32>
    %13 = math.exp %12 : vector<16x128xf32>
    %cst_7 = arith.constant 1.000000e+00 : f32
    %14 = vector.broadcast %cst_7 : f32 to vector<16x128xf32>
    %15 = arith.addf %14, %13 : vector<16x128xf32>
    %16 = arith.divf %14, %15 : vector<16x128xf32>
    %17 = vector.broadcast %5 : vector<1x128xf32> to vector<16x128xf32>
    %18 = arith.mulf %17, %16 : vector<16x128xf32>
    %19 = arith.addf %4, %18 : vector<16x128xf32>
    %20 = vector.extract_strided_slice %3 {offsets = [1, 0], sizes = [1, 128], strides = [1, 1]} : vector<8x128xf32> to vector<1x128xf32>
    %21 = vector.extract_strided_slice %1 {offsets = [1, 0], sizes = [1, 128], strides = [1, 1]} : vector<8x128xf32> to vector<1x128xf32>
    %22 = vector.broadcast %21 : vector<1x128xf32> to vector<16x128xf32>
    %23 = arith.mulf %22, %0 : vector<16x128xf32>
    %24 = vector.extract_strided_slice %2 {offsets = [1, 0], sizes = [1, 128], strides = [1, 1]} : vector<8x128xf32> to vector<1x128xf32>
    %25 = vector.broadcast %24 : vector<1x128xf32> to vector<16x128xf32>
    %26 = arith.addf %23, %25 : vector<16x128xf32>
    %27 = arith.negf %26 : vector<16x128xf32>
    %28 = math.exp %27 : vector<16x128xf32>
    %cst_8 = arith.constant 1.000000e+00 : f32
    %29 = vector.broadcast %cst_8 : f32 to vector<16x128xf32>
    %30 = arith.addf %29, %28 : vector<16x128xf32>
    %31 = arith.divf %29, %30 : vector<16x128xf32>
    %32 = vector.broadcast %20 : vector<1x128xf32> to vector<16x128xf32>
    %33 = arith.mulf %32, %31 : vector<16x128xf32>
    %34 = arith.addf %19, %33 : vector<16x128xf32>
    %35 = vector.extract_strided_slice %3 {offsets = [2, 0], sizes = [1, 128], strides = [1, 1]} : vector<8x128xf32> to vector<1x128xf32>
    %36 = vector.extract_strided_slice %1 {offsets = [2, 0], sizes = [1, 128], strides = [1, 1]} : vector<8x128xf32> to vector<1x128xf32>
    %37 = vector.broadcast %36 : vector<1x128xf32> to vector<16x128xf32>
    %38 = arith.mulf %37, %0 : vector<16x128xf32>
    %39 = vector.extract_strided_slice %2 {offsets = [2, 0], sizes = [1, 128], strides = [1, 1]} : vector<8x128xf32> to vector<1x128xf32>
    %40 = vector.broadcast %39 : vector<1x128xf32> to vector<16x128xf32>
    %41 = arith.addf %38, %40 : vector<16x128xf32>
    %42 = arith.negf %41 : vector<16x128xf32>
    %43 = math.exp %42 : vector<16x128xf32>
    %cst_9 = arith.constant 1.000000e+00 : f32
    %44 = vector.broadcast %cst_9 : f32 to vector<16x128xf32>
    %45 = arith.addf %44, %43 : vector<16x128xf32>
    %46 = arith.divf %44, %45 : vector<16x128xf32>
    %47 = vector.broadcast %35 : vector<1x128xf32> to vector<16x128xf32>
    %48 = arith.mulf %47, %46 : vector<16x128xf32>
    %49 = arith.addf %34, %48 : vector<16x128xf32>
    %50 = vector.extract_strided_slice %3 {offsets = [3, 0], sizes = [1, 128], strides = [1, 1]} : vector<8x128xf32> to vector<1x128xf32>
    %51 = vector.extract_strided_slice %1 {offsets = [3, 0], sizes = [1, 128], strides = [1, 1]} : vector<8x128xf32> to vector<1x128xf32>
    %52 = vector.broadcast %51 : vector<1x128xf32> to vector<16x128xf32>
    %53 = arith.mulf %52, %0 : vector<16x128xf32>
    %54 = vector.extract_strided_slice %2 {offsets = [3, 0], sizes = [1, 128], strides = [1, 1]} : vector<8x128xf32> to vector<1x128xf32>
    %55 = vector.broadcast %54 : vector<1x128xf32> to vector<16x128xf32>
    %56 = arith.addf %53, %55 : vector<16x128xf32>
    %57 = arith.negf %56 : vector<16x128xf32>
    %58 = math.exp %57 : vector<16x128xf32>
    %cst_10 = arith.constant 1.000000e+00 : f32
    %59 = vector.broadcast %cst_10 : f32 to vector<16x128xf32>
    %60 = arith.addf %59, %58 : vector<16x128xf32>
    %61 = arith.divf %59, %60 : vector<16x128xf32>
    %62 = vector.broadcast %50 : vector<1x128xf32> to vector<16x128xf32>
    %63 = arith.mulf %62, %61 : vector<16x128xf32>
    %64 = arith.addf %49, %63 : vector<16x128xf32>
    %65 = vector.extract_strided_slice %3 {offsets = [4, 0], sizes = [1, 128], strides = [1, 1]} : vector<8x128xf32> to vector<1x128xf32>
    %66 = vector.extract_strided_slice %1 {offsets = [4, 0], sizes = [1, 128], strides = [1, 1]} : vector<8x128xf32> to vector<1x128xf32>
    %67 = vector.broadcast %66 : vector<1x128xf32> to vector<16x128xf32>
    %68 = arith.mulf %67, %0 : vector<16x128xf32>
    %69 = vector.extract_strided_slice %2 {offsets = [4, 0], sizes = [1, 128], strides = [1, 1]} : vector<8x128xf32> to vector<1x128xf32>
    %70 = vector.broadcast %69 : vector<1x128xf32> to vector<16x128xf32>
    %71 = arith.addf %68, %70 : vector<16x128xf32>
    %72 = arith.negf %71 : vector<16x128xf32>
    %73 = math.exp %72 : vector<16x128xf32>
    %cst_11 = arith.constant 1.000000e+00 : f32
    %74 = vector.broadcast %cst_11 : f32 to vector<16x128xf32>
    %75 = arith.addf %74, %73 : vector<16x128xf32>
    %76 = arith.divf %74, %75 : vector<16x128xf32>
    %77 = vector.broadcast %65 : vector<1x128xf32> to vector<16x128xf32>
    %78 = arith.mulf %77, %76 : vector<16x128xf32>
    %79 = arith.addf %64, %78 : vector<16x128xf32>
    %80 = vector.extract_strided_slice %3 {offsets = [5, 0], sizes = [1, 128], strides = [1, 1]} : vector<8x128xf32> to vector<1x128xf32>
    %81 = vector.extract_strided_slice %1 {offsets = [5, 0], sizes = [1, 128], strides = [1, 1]} : vector<8x128xf32> to vector<1x128xf32>
    %82 = vector.broadcast %81 : vector<1x128xf32> to vector<16x128xf32>
    %83 = arith.mulf %82, %0 : vector<16x128xf32>
    %84 = vector.extract_strided_slice %2 {offsets = [5, 0], sizes = [1, 128], strides = [1, 1]} : vector<8x128xf32> to vector<1x128xf32>
    %85 = vector.broadcast %84 : vector<1x128xf32> to vector<16x128xf32>
    %86 = arith.addf %83, %85 : vector<16x128xf32>
    %87 = arith.negf %86 : vector<16x128xf32>
    %88 = math.exp %87 : vector<16x128xf32>
    %cst_12 = arith.constant 1.000000e+00 : f32
    %89 = vector.broadcast %cst_12 : f32 to vector<16x128xf32>
    %90 = arith.addf %89, %88 : vector<16x128xf32>
    %91 = arith.divf %89, %90 : vector<16x128xf32>
    %92 = vector.broadcast %80 : vector<1x128xf32> to vector<16x128xf32>
    %93 = arith.mulf %92, %91 : vector<16x128xf32>
    %94 = arith.addf %79, %93 : vector<16x128xf32>
    %95 = vector.extract_strided_slice %3 {offsets = [6, 0], sizes = [1, 128], strides = [1, 1]} : vector<8x128xf32> to vector<1x128xf32>
    %96 = vector.extract_strided_slice %1 {offsets = [6, 0], sizes = [1, 128], strides = [1, 1]} : vector<8x128xf32> to vector<1x128xf32>
    %97 = vector.broadcast %96 : vector<1x128xf32> to vector<16x128xf32>
    %98 = arith.mulf %97, %0 : vector<16x128xf32>
    %99 = vector.extract_strided_slice %2 {offsets = [6, 0], sizes = [1, 128], strides = [1, 1]} : vector<8x128xf32> to vector<1x128xf32>
    %100 = vector.broadcast %99 : vector<1x128xf32> to vector<16x128xf32>
    %101 = arith.addf %98, %100 : vector<16x128xf32>
    %102 = arith.negf %101 : vector<16x128xf32>
    %103 = math.exp %102 : vector<16x128xf32>
    %cst_13 = arith.constant 1.000000e+00 : f32
    %104 = vector.broadcast %cst_13 : f32 to vector<16x128xf32>
    %105 = arith.addf %104, %103 : vector<16x128xf32>
    %106 = arith.divf %104, %105 : vector<16x128xf32>
    %107 = vector.broadcast %95 : vector<1x128xf32> to vector<16x128xf32>
    %108 = arith.mulf %107, %106 : vector<16x128xf32>
    %109 = arith.addf %94, %108 : vector<16x128xf32>
    %110 = vector.extract_strided_slice %3 {offsets = [7, 0], sizes = [1, 128], strides = [1, 1]} : vector<8x128xf32> to vector<1x128xf32>
    %111 = vector.extract_strided_slice %1 {offsets = [7, 0], sizes = [1, 128], strides = [1, 1]} : vector<8x128xf32> to vector<1x128xf32>
    %112 = vector.broadcast %111 : vector<1x128xf32> to vector<16x128xf32>
    %113 = arith.mulf %112, %0 : vector<16x128xf32>
    %114 = vector.extract_strided_slice %2 {offsets = [7, 0], sizes = [1, 128], strides = [1, 1]} : vector<8x128xf32> to vector<1x128xf32>
    %115 = vector.broadcast %114 : vector<1x128xf32> to vector<16x128xf32>
    %116 = arith.addf %113, %115 : vector<16x128xf32>
    %117 = arith.negf %116 : vector<16x128xf32>
    %118 = math.exp %117 : vector<16x128xf32>
    %cst_14 = arith.constant 1.000000e+00 : f32
    %119 = vector.broadcast %cst_14 : f32 to vector<16x128xf32>
    %120 = arith.addf %119, %118 : vector<16x128xf32>
    %121 = arith.divf %119, %120 : vector<16x128xf32>
    %122 = vector.broadcast %110 : vector<1x128xf32> to vector<16x128xf32>
    %123 = arith.mulf %122, %121 : vector<16x128xf32>
    %124 = arith.addf %109, %123 : vector<16x128xf32>
    %125 = arith.truncf %124 : vector<16x128xf32> to vector<16x128xbf16>
    %c0_15 = arith.constant 0 : index
    %c0_16 = arith.constant 0 : index
    %126 = vector.load %arg6[%c0_15, %c0_16] : memref<16x128xbf16, #tpu.memory_space<vmem>>, vector<16x128xbf16>
    tpu.vector_store %arg6[%c0_15, %c0_16], %125 {strides = array<i32>} : memref<16x128xbf16, #tpu.memory_space<vmem>>, vector<16x128xbf16>,
    return
  }
  func.func @transform_0(%arg0: i32, %arg1: i32) -> (i32, i32) {
    %c0_i32 = arith.constant 0 : i32
    return %arg0, %arg1 : i32, i32
  }
  func.func @transform_1(%arg0: i32, %arg1: i32) -> (i32, i32) {
    %c0_i32 = arith.constant 0 : i32
    %c0_i32_0 = arith.constant 0 : i32
    return %c0_i32, %arg1 : i32, i32
  }
  func.func @transform_2(%arg0: i32, %arg1: i32) -> (i32, i32) {
    %c0_i32 = arith.constant 0 : i32
    %c0_i32_0 = arith.constant 0 : i32
    return %c0_i32, %arg1 : i32, i32
  }
  func.func @transform_3(%arg0: i32, %arg1: i32) -> (i32, i32) {
    %c0_i32 = arith.constant 0 : i32
    %c0_i32_0 = arith.constant 0 : i32
    return %c0_i32, %arg1 : i32, i32
  }
  func.func @transform_4(%arg0: i32, %arg1: i32) -> (i32, i32) {
    %c0_i32 = arith.constant 0 : i32
    return %arg0, %arg1 : i32, i32
  }
}

</mosaic_0001>

<llo_original>
// kernel: tpu_custom_call.1
$region0: #{tpu_custom_call.1}
  #allocation0 [shape = 'u32[]', space=smem, size = 0x4, offset = 0x4, fixed_abs, tag = 'smem constant byte address 0x4 - core index']
  #allocation1 [shape = 'u32[72,128]{1,0:T(1,128)}', space=vmem, size = 0x9000, scoped, tag = 'internal scratch']
  %s0 = inlined_call_operand.hbm [shape: f32[16,256], index: 0, kind: input, shape index: {}]
  %s1 = inlined_call_operand.hbm [shape: f32[8,256], index: 1, kind: input, shape index: {}]
  %s2 = inlined_call_operand.hbm [shape: f32[8,256], index: 2, kind: input, shape index: {}]
  %s3 = inlined_call_operand.hbm [shape: f32[8,256], index: 3, kind: input, shape index: {}]
  %s4 = inlined_call_operand.hbm [shape: bf16[16,256], index: 4, kind: output, shape index: {}]
  %s5 = sld [smem:[#allocation0]]
  $region65: #{tpu_custom_call.1} parent=0
    _
  %s7 = ssub.s32 1, %s5
  %s8 = scalar_select 0, %s7, %s5
  $region1: #{tpu_custom_call.1} parent=0
    #allocation2 [shape = 'u8[16384]{0}', space=vmem, size = 0x4000, scoped, tag = 'input window, operand 0']
    #allocation3 [shape = 's32[2]{0}', space=sflag, size = 0x8, scoped, tag = 'scoped memory for tpu_custom_call.1']
    #allocation4 [shape = 's32[2]{0}', space=sflag, size = 0x8, scoped, tag = 'scoped memory for tpu_custom_call.1']
    #allocation5 [shape = 'u8[8192]{0}', space=vmem, size = 0x2000, scoped, tag = 'input window, operand 1']
    #allocation6 [shape = 's32[2]{0}', space=sflag, size = 0x8, scoped, tag = 'scoped memory for tpu_custom_call.1']
    #allocation7 [shape = 'u8[8192]{0}', space=vmem, size = 0x2000, scoped, tag = 'input window, operand 2']
    #allocation8 [shape = 'u8[8192]{0}', space=vmem, size = 0x2000, scoped, tag = 'input window, operand 3']
    #allocation9 [shape = 's32[2]{0}', space=sflag, size = 0x8, scoped, tag = 'scoped memory for tpu_custom_call.1']
    #allocation10 [shape = 'u8[8192]{0}', space=vmem, size = 0x2000, scoped, tag = 'output window, operand 0']
    %9 = vsyncpa [#allocation3], 0
    %s10 = scalar_lea.sflag [#allocation3], 1
    %11 = vsyncpa %s10, 0
    %12 = vsyncpa [#allocation6], 0
    %s13 = scalar_lea.sflag [#allocation6], 1
    %14 = vsyncpa %s13, 0
    %15 = vsyncpa [#allocation9], 0
    %s16 = scalar_lea.sflag [#allocation9], 1
    %17 = vsyncpa %s16, 0
    %18 = vsyncpa [#allocation4], 0
    %s19 = scalar_lea.sflag [#allocation4], 1
    %20 = vsyncpa %s19, 0
    loop: start=0, step=1, limit=4
    $region2: #{tpu_custom_call.1} parent=1 // loop_pre_header
      _
    $region3: #{tpu_custom_call.1} parent=1 // loop_header
      %s22 = sphi 0, %s26
      %p23 = scmp.ge.s32.totalorder %s22, 4
      %s29 = sphi 0, %s41
      %s30 = sphi 0, %s37
      %s31 = sphi 0, %s29
      %s32 = sphi 0, %s30
      %s33 = sphi 0, %s31
      %s34 = sphi 0, %s32
      %s46 = sphi 0, %s48
      %s49 = sphi 0, %s46
      %s50 = sphi 0, %s49
      %s66 = sphi 0, %s50
      %s72 = sphi 0, %s74
      %s75 = sphi 0, %s72
      %s76 = sphi 0, %s75
      %s92 = sphi 0, %s76
      %s98 = sphi 0, %s100
      %s101 = sphi 0, %s98
      %s102 = sphi 0, %s101
      %s118 = sphi 0, %s102
      %s124 = sphi 0, %s126
      %s127 = sphi 0, %s124
      %s128 = sphi 0, %s127
      %s144 = sphi 0, %s128
      %s152 = sphi 0, %s154
      %s155 = sphi 0, %s152
      %s156 = sphi 0, %s155
      %s172 = sphi 0, %s156
    $region4: #{tpu_custom_call.1} parent=1 // loop_header_branch
      %25 = sbr.rel (%p23) target = $region8
    $region5: #{tpu_custom_call.1} parent=1 // loop_body
      %s27 = ssub.s32 %s22, 1
      %s28 = ssub.s32 %s22, 2
      %s35 = sadd.s32 1, %s30
      %p36 = scmp.ge.s32.totalorder %s35, 2
      %s37 = scalar_select %p36, 0, %s35
      %s38 = sadd.s32 1, %s29
      %s39 = scalar_select %p36, %s38, %s29
      %p40 = scmp.ge.s32.totalorder %s39, 1
      %s41 = scalar_select %p40, 0, %s39
      %s42 = ssub.s32 %s29, %s41
      %s43 = ssub.s32 %s30, %s37
      %s44 = sor.u32 %s42, %s43
      %p45 = scmp.eq.s32.totalorder %s44, 0
      %s47 = sadd.s32 %s46, 1
      %s48 = scalar_select %p45, %s46, %s47
      %p51 = pneg %p45
      %p52 = scmp.eq.s32.totalorder %s22, 1
      %p53 = por %p51, %p52
      %p54 = scmp.ne.s32.totalorder %s46, %s49
      %p55 = scmp.eq.s32.totalorder %s22, 0
      %p56 = por %p54, %p55
      %p57 = scmp.ne.s32.totalorder %s46, %s49
      %p58 = scmp.eq.s32.totalorder %s27, 1
      %p59 = por %p57, %p58
      %p60 = scmp.ne.s32.totalorder %s49, %s50
      %p61 = scmp.eq.s32.totalorder %s27, 0
      %p62 = por %p60, %p61
      %p63 = scmp.ne.s32.totalorder %s49, %s50
      %p64 = scmp.eq.s32.totalorder %s28, 1
      %p65 = por %p63, %p64
      %p67 = scmp.ne.s32.totalorder %s50, %s66
      %p68 = scmp.eq.s32.totalorder %s28, 0
      %p69 = por %p67, %p68
      %s70 = ssub.s32 %s30, %s37
      %p71 = scmp.eq.s32.totalorder %s70, 0
      %s73 = sadd.s32 %s72, 1
      %s74 = scalar_select %p71, %s72, %s73
      %p77 = pneg %p71
      %p78 = scmp.eq.s32.totalorder %s22, 1
      %p79 = por %p77, %p78
      %p80 = scmp.ne.s32.totalorder %s72, %s75
      %p81 = scmp.eq.s32.totalorder %s22, 0
      %p82 = por %p80, %p81
      %p83 = scmp.ne.s32.totalorder %s72, %s75
      %p84 = scmp.eq.s32.totalorder %s27, 1
      %p85 = por %p83, %p84
      %p86 = scmp.ne.s32.totalorder %s75, %s76
      %p87 = scmp.eq.s32.totalorder %s27, 0
      %p88 = por %p86, %p87
      %p89 = scmp.ne.s32.totalorder %s75, %s76
      %p90 = scmp.eq.s32.totalorder %s28, 1
      %p91 = por %p89, %p90
      %p93 = scmp.ne.s32.totalorder %s76, %s92
      %p94 = scmp.eq.s32.totalorder %s28, 0
      %p95 = por %p93, %p94
      %s96 = ssub.s32 %s30, %s37
      %p97 = scmp.eq.s32.totalorder %s96, 0
      %s99 = sadd.s32 %s98, 1
      %s100 = scalar_select %p97, %s98, %s99
      %p103 = pneg %p97
      %p104 = scmp.eq.s32.totalorder %s22, 1
      %p105 = por %p103, %p104
      %p106 = scmp.ne.s32.totalorder %s98, %s101
      %p107 = scmp.eq.s32.totalorder %s22, 0
      %p108 = por %p106, %p107
      %p109 = scmp.ne.s32.totalorder %s98, %s101
      %p110 = scmp.eq.s32.totalorder %s27, 1
      %p111 = por %p109, %p110
      %p112 = scmp.ne.s32.totalorder %s101, %s102
      %p113 = scmp.eq.s32.totalorder %s27, 0
      %p114 = por %p112, %p113
      %p115 = scmp.ne.s32.totalorder %s101, %s102
      %p116 = scmp.eq.s32.totalorder %s28, 1
      %p117 = por %p115, %p116
      %p119 = scmp.ne.s32.totalorder %s102, %s118
      %p120 = scmp.eq.s32.totalorder %s28, 0
      %p121 = por %p119, %p120
      %s122 = ssub.s32 %s30, %s37
      %p123 = scmp.eq.s32.totalorder %s122, 0
      %s125 = sadd.s32 %s124, 1
      %s126 = scalar_select %p123, %s124, %s125
      %p129 = pneg %p123
      %p130 = scmp.eq.s32.totalorder %s22, 1
      %p131 = por %p129, %p130
      %p132 = scmp.ne.s32.totalorder %s124, %s127
      %p133 = scmp.eq.s32.totalorder %s22, 0
      %p134 = por %p132, %p133
      %p135 = scmp.ne.s32.totalorder %s124, %s127
      %p136 = scmp.eq.s32.totalorder %s27, 1
      %p137 = por %p135, %p136
      %p138 = scmp.ne.s32.totalorder %s127, %s128
      %p139 = scmp.eq.s32.totalorder %s27, 0
      %p140 = por %p138, %p139
      %p141 = scmp.ne.s32.totalorder %s127, %s128
      %p142 = scmp.eq.s32.totalorder %s28, 1
      %p143 = por %p141, %p142
      %p145 = scmp.ne.s32.totalorder %s128, %s144
      %p146 = scmp.eq.s32.totalorder %s28, 0
      %p147 = por %p145, %p146
      %s148 = ssub.s32 %s29, %s41
      %s149 = ssub.s32 %s30, %s37
      %s150 = sor.u32 %s148, %s149
      %p151 = scmp.eq.s32.totalorder %s150, 0
      %s153 = sadd.s32 %s152, 1
      %s154 = scalar_select %p151, %s152, %s153
      %p157 = pneg %p151
      %p158 = scmp.eq.s32.totalorder %s22, 1
      %p159 = por %p157, %p158
      %p160 = scmp.ne.s32.totalorder %s152, %s155
      %p161 = scmp.eq.s32.totalorder %s22, 0
      %p162 = por %p160, %p161
      %p163 = scmp.ne.s32.totalorder %s152, %s155
      %p164 = scmp.eq.s32.totalorder %s27, 1
      %p165 = por %p163, %p164
      %p166 = scmp.ne.s32.totalorder %s155, %s156
      %p167 = scmp.eq.s32.totalorder %s27, 0
      %p168 = por %p166, %p167
      %p169 = scmp.ne.s32.totalorder %s155, %s156
      %p170 = scmp.eq.s32.totalorder %s28, 1
      %p171 = por %p169, %p170
      %p173 = scmp.ne.s32.totalorder %s156, %s172
      %p174 = scmp.eq.s32.totalorder %s28, 0
      %p175 = por %p173, %p174
      %p176 = scmp.le.s32.totalorder 1, %s22
      %p177 = scmp.lt.s32.totalorder %s22, 3
      %p178 = pnand %p176, %p177
      %p179 = pneg %p178
      // Predicated region
      $region9: #{tpu_custom_call.1} parent=5 // pred_check
        _
      $region10: #{tpu_custom_call.1} parent=5 // pred_check_branch
        %181 = sbr.rel (%p178) target = $region12
      $region11: #{tpu_custom_call.1} parent=5 // pred_region
        %s182 = ssub.s32 %s22, 1
      $region12: #{tpu_custom_call.1} parent=5 // pred_fallthru
        _
      %p183 = scmp.lt.s32.totalorder %s22, 2
      // Predicated region
      $region13: #{tpu_custom_call.1} parent=5 // pred_check
        %p184 = pneg %p183
      $region14: #{tpu_custom_call.1} parent=5 // pred_check_branch
        %186 = sbr.rel (%p184) target = $region16
      $region15: #{tpu_custom_call.1} parent=5 // pred_region
        // Predicated region
        $region17: #{tpu_custom_call.1} parent=15 // pred_check
          %p187 = pneg %p56
        $region18: #{tpu_custom_call.1} parent=15 // pred_check_branch
          %189 = sbr.rel (%p187) target = $region20
        $region19: #{tpu_custom_call.1} parent=15 // pred_region
          %s190 = sand.u32 %s46, 1
          %s191 = scalar_lea.sflag [#allocation3], %s190
          %s192 = sand.u32 %s46, 1
          %s193 = smul.addr %s192, 16
          %s194 = scalar_lea.vmem [#allocation2], %s193
          %s195 = smul.u32 2, %s29
          %197 = vsyncadd %s191, 0
          %s198 = smul.addr %s195, 2
          %s199 = sadd.s32 %s30, %s198
          %s200 = smul.addr %s199, 8
          %s201 = scalar_lea.hbm %s0, %s200
          %s202 = sshll.u32 %s201, 4
          %s203 = int_to_ptr.hbm [resolvable:$true] %s202
          %s204 = sshll.u32 %s194, 4
          %s205 = int_to_ptr.vmem [resolvable:$true] %s204
          %210 = dma.hbm_to_vmem [thread:$0]  %s203, 256, %s205, %s191, 256, 128, 8
        $region20: #{tpu_custom_call.1} parent=15 // pred_fallthru
          _
        // Predicated region
        $region21: #{tpu_custom_call.1} parent=15 // pred_check
          %p211 = pneg %p82
        $region22: #{tpu_custom_call.1} parent=15 // pred_check_branch
          %213 = sbr.rel (%p211) target = $region24
        $region23: #{tpu_custom_call.1} parent=15 // pred_region
          %s214 = sand.u32 %s22, 1
          %s215 = scalar_lea.sflag [#allocation6], %s214
          %s216 = sand.u32 %s72, 1
          %s217 = smul.addr %s216, 8
          %s218 = scalar_lea.vmem [#allocation5], %s217
          %220 = vsyncadd %s215, 0
          %s221 = smul.addr %s30, 8
          %s222 = scalar_lea.hbm %s1, %s221
          %s224 = sshll.u32 %s222, 4
          %s225 = int_to_ptr.hbm [resolvable:$true] %s224
          %s226 = sshll.u32 %s218, 4
          %s227 = int_to_ptr.vmem [resolvable:$true] %s226
          %229 = dma.hbm_to_vmem [thread:$0]  %s225, 128, %s227, %s215
        $region24: #{tpu_custom_call.1} parent=15 // pred_fallthru
          _
        // Predicated region
        $region25: #{tpu_custom_call.1} parent=15 // pred_check
          %p230 = pneg %p108
        $region26: #{tpu_custom_call.1} parent=15 // pred_check_branch
          %232 = sbr.rel (%p230) target = $region28
        $region27: #{tpu_custom_call.1} parent=15 // pred_region
          %s233 = sand.u32 %s22, 1
          %s234 = scalar_lea.sflag [#allocation6], %s233
          %s235 = sand.u32 %s98, 1
          %s236 = smul.addr %s235, 8
          %s237 = scalar_lea.vmem [#allocation7], %s236
          %239 = vsyncadd %s234, 0
          %s240 = smul.addr %s30, 8
          %s241 = scalar_lea.hbm %s2, %s240
          %s243 = sshll.u32 %s241, 4
          %s244 = int_to_ptr.hbm [resolvable:$true] %s243
          %s245 = sshll.u32 %s237, 4
          %s246 = int_to_ptr.vmem [resolvable:$true] %s245
          %248 = dma.hbm_to_vmem [thread:$0]  %s244, 128, %s246, %s234
        $region28: #{tpu_custom_call.1} parent=15 // pred_fallthru
          _
        // Predicated region
        $region29: #{tpu_custom_call.1} parent=15 // pred_check
          %p249 = pneg %p134
        $region30: #{tpu_custom_call.1} parent=15 // pred_check_branch
          %251 = sbr.rel (%p249) target = $region32
        $region31: #{tpu_custom_call.1} parent=15 // pred_region
          %s252 = sand.u32 %s124, 1
          %s253 = scalar_lea.sflag [#allocation9], %s252
          %s254 = sand.u32 %s124, 1
          %s255 = smul.addr %s254, 8
          %s256 = scalar_lea.vmem [#allocation8], %s255
          %258 = vsyncadd %s253, 0
          %s259 = smul.addr %s30, 8
          %s260 = scalar_lea.hbm %s3, %s259
          %s262 = sshll.u32 %s260, 4
          %s263 = int_to_ptr.hbm [resolvable:$true] %s262
          %s264 = sshll.u32 %s256, 4
          %s265 = int_to_ptr.vmem [resolvable:$true] %s264
          %267 = dma.hbm_to_vmem [thread:$0]  %s263, 128, %s265, %s253
        $region32: #{tpu_custom_call.1} parent=15 // pred_fallthru
          _
      $region16: #{tpu_custom_call.1} parent=5 // pred_fallthru
        _
      %p268 = scmp.le.s32.totalorder 1, %s22
      %p269 = scmp.lt.s32.totalorder %s22, 3
      %p270 = pnand %p268, %p269
      %p271 = pneg %p270
      // Predicated region
      $region33: #{tpu_custom_call.1} parent=5 // pred_check
        _
      $region34: #{tpu_custom_call.1} parent=5 // pred_check_branch
        %273 = sbr.rel (%p270) target = $region36
      $region35: #{tpu_custom_call.1} parent=5 // pred_region
        %s274 = ssub.s32 %s22, 1
        %s275 = sand.u32 %s49, 1
        %s276 = scalar_lea.sflag [#allocation3], %s275
        %s277 = sand.u32 %s49, 1
        %s278 = smul.addr %s277, 16
        %s279 = scalar_lea.vmem [#allocation2], %s278
        // Predicated region
        $region37: #{tpu_custom_call.1} parent=35 // pred_check
          %p280 = pneg %p62
        $region38: #{tpu_custom_call.1} parent=35 // pred_check_branch
          %282 = sbr.rel (%p280) target = $region40
        $region39: #{tpu_custom_call.1} parent=35 // pred_region
          %284 = dma.done %s276, 256
        $region40: #{tpu_custom_call.1} parent=35 // pred_fallthru
          _
        %s285 = sand.u32 %s27, 1
        %s286 = scalar_lea.sflag [#allocation6], %s285
        %s287 = sand.u32 %s75, 1
        %s288 = smul.addr %s287, 8
        %s289 = scalar_lea.vmem [#allocation5], %s288
        // Predicated region
        $region41: #{tpu_custom_call.1} parent=35 // pred_check
          %p290 = pneg %p88
        $region42: #{tpu_custom_call.1} parent=35 // pred_check_branch
          %292 = sbr.rel (%p290) target = $region44
        $region43: #{tpu_custom_call.1} parent=35 // pred_region
          %294 = dma.done %s286, 128
        $region44: #{tpu_custom_call.1} parent=35 // pred_fallthru
          _
        %s295 = sand.u32 %s27, 1
        %s296 = scalar_lea.sflag [#allocation6], %s295
        %s297 = sand.u32 %s101, 1
        %s298 = smul.addr %s297, 8
        %s299 = scalar_lea.vmem [#allocation7], %s298
        // Predicated region
        $region45: #{tpu_custom_call.1} parent=35 // pred_check
          %p300 = pneg %p114
        $region46: #{tpu_custom_call.1} parent=35 // pred_check_branch
          %302 = sbr.rel (%p300) target = $region48
        $region47: #{tpu_custom_call.1} parent=35 // pred_region
          %304 = dma.done %s296, 128
        $region48: #{tpu_custom_call.1} parent=35 // pred_fallthru
          _
        %s305 = sand.u32 %s127, 1
        %s306 = scalar_lea.sflag [#allocation9], %s305
        %s307 = sand.u32 %s127, 1
        %s308 = smul.addr %s307, 8
        %s309 = scalar_lea.vmem [#allocation8], %s308
        // Predicated region
        $region49: #{tpu_custom_call.1} parent=35 // pred_check
          %p310 = pneg %p140
        $region50: #{tpu_custom_call.1} parent=35 // pred_check_branch
          %312 = sbr.rel (%p310) target = $region52
        $region51: #{tpu_custom_call.1} parent=35 // pred_region
          %314 = dma.done %s306, 128
        $region52: #{tpu_custom_call.1} parent=35 // pred_fallthru
          _
        %s315 = sand.u32 %s49, 1
        %s316 = scalar_lea.sflag [#allocation3], %s315
        %s317 = sand.u32 %s49, 1
        %s318 = smul.addr %s317, 16
        %s319 = scalar_lea.vmem [#allocation2], %s318
        %p320 = pneg %p62
        %p321 = pneg %p59
        %s322 = sand.u32 %s27, 1
        %s323 = scalar_lea.sflag [#allocation6], %s322
        %s324 = sand.u32 %s75, 1
        %s325 = smul.addr %s324, 8
        %s326 = scalar_lea.vmem [#allocation5], %s325
        %p327 = pneg %p88
        %p328 = pneg %p85
        %s329 = sand.u32 %s27, 1
        %s330 = scalar_lea.sflag [#allocation6], %s329
        %s331 = sand.u32 %s101, 1
        %s332 = smul.addr %s331, 8
        %s333 = scalar_lea.vmem [#allocation7], %s332
        %p334 = pneg %p114
        %p335 = pneg %p111
        %s336 = sand.u32 %s127, 1
        %s337 = scalar_lea.sflag [#allocation9], %s336
        %s338 = sand.u32 %s127, 1
        %s339 = smul.addr %s338, 8
        %s340 = scalar_lea.vmem [#allocation8], %s339
        %p341 = pneg %p140
        %p342 = pneg %p137
        %p343 = pneg %p168
        %p344 = pneg %p165
        %s345 = sand.u32 %s155, 1
        %s346 = scalar_lea.sflag [#allocation4], %s345
        %s347 = sand.u32 %s155, 1
        %s348 = smul.addr %s347, 8
        %s349 = scalar_lea.vmem [#allocation10], %s348
        %s350 = smul.u32 2, %s31
        %s351 = smul.u32 2, %s31
        %v352 = vld [vmem:[%s279] sm:$0xff]
        %v353 = vld [vmem:[%s279 + $0x8] sm:$0xff]
        %v354 = vld [vmem:[%s289] sm:$0xff]
        %v355 = vld [vmem:[%s299] sm:$0xff]
        %v356 = vld [vmem:[%s309] sm:$0xff]
        %v357 = vperm.slane %v354, 0
        %v358 = vmul.f32 %v357, %v352
        %v359 = vmul.f32 %v357, %v353
        %v360 = vperm.slane %v355, 0
        %v361 = vadd.f32 %v358, %v360
        %v362 = vadd.f32 %v359, %v360
        %v363 = vxor.u32 %v361, 2147483648
        %v364 = vxor.u32 %v362, 2147483648
        %v365 = vmul.f32 %v363, 1.442695
        %v366 = vpow.pop %v365
        %v367 = vmul.f32 %v364, 1.442695
        %v368 = vpow.pop %v367
        %v369 = vadd.f32 %v366, 1.0
        %v370 = vadd.f32 %v368, 1.0
        %v371 = vrcp.pop %v369
        %v372 = vmul.f32 %v369, %v371
        %v373 = vsub.f32 1.0, %v372
        %v374 = vmul.f32 %v371, %v373
        %v375 = vadd.f32 %v371, %v374
        %vm376 = vweird.f32 %v369
        %vm377 = vweird.f32 %v371
        %vm378 = vmor %vm376, %vm377
        %v379 = vsel %vm378, %v371, %v375
        %v380 = vand.u32 2147483647, %v369
        %vm381 = vcmp.eq.f32.partialorder %v380, 8.507059e+37
        %v382 = vand.u32 %v369, 2147483648
        %v383 = vor.u32 1.1754944e-38, %v382
        %v384 = vsel %vm381, %v383, %v379
        %v385 = vmul.f32 1.0, %v384
        %v386 = vrcp.pop %v370
        %v387 = vmul.f32 %v370, %v386
        %v388 = vsub.f32 1.0, %v387
        %v389 = vmul.f32 %v386, %v388
        %v390 = vadd.f32 %v386, %v389
        %vm391 = vweird.f32 %v370
        %vm392 = vweird.f32 %v386
        %vm393 = vmor %vm391, %vm392
        %v394 = vsel %vm393, %v386, %v390
        %v395 = vand.u32 2147483647, %v370
        %vm396 = vcmp.eq.f32.partialorder %v395, 8.507059e+37
        %v397 = vand.u32 %v370, 2147483648
        %v398 = vor.u32 1.1754944e-38, %v397
        %v399 = vsel %vm396, %v398, %v394
        %v400 = vmul.f32 1.0, %v399
        %v401 = vperm.slane %v356, 0
        %v402 = vmul.f32 %v401, %v385
        %v403 = vmul.f32 %v401, %v400
        %v404 = vadd.f32 %v402, 0.0
        %v405 = vadd.f32 %v403, 0.0
        %v406 = vperm.slane %v354, 1
        %v407 = vmul.f32 %v406, %v352
        %v408 = vmul.f32 %v406, %v353
        %v409 = vperm.slane %v355, 1
        %v410 = vadd.f32 %v407, %v409
        %v411 = vadd.f32 %v408, %v409
        %v412 = vxor.u32 %v410, 2147483648
        %v413 = vxor.u32 %v411, 2147483648
        %v414 = vmul.f32 %v412, 1.442695
        %v415 = vpow.pop %v414
        %v416 = vmul.f32 %v413, 1.442695
        %v417 = vpow.pop %v416
        %v418 = vadd.f32 %v415, 1.0
        %v419 = vadd.f32 %v417, 1.0
        %v420 = vrcp.pop %v418
        %v421 = vmul.f32 %v418, %v420
        %v422 = vsub.f32 1.0, %v421
        %v423 = vmul.f32 %v420, %v422
        %v424 = vadd.f32 %v420, %v423
        %vm425 = vweird.f32 %v418
        %vm426 = vweird.f32 %v420
        %vm427 = vmor %vm425, %vm426
        %v428 = vsel %vm427, %v420, %v424
        %v429 = vand.u32 2147483647, %v418
        %vm430 = vcmp.eq.f32.partialorder %v429, 8.507059e+37
        %v431 = vand.u32 %v418, 2147483648
        %v432 = vor.u32 1.1754944e-38, %v431
        %v433 = vsel %vm430, %v432, %v428
        %v434 = vmul.f32 1.0, %v433
        %v435 = vrcp.pop %v419
        %v436 = vmul.f32 %v419, %v435
        %v437 = vsub.f32 1.0, %v436
        %v438 = vmul.f32 %v435, %v437
        %v439 = vadd.f32 %v435, %v438
        %vm440 = vweird.f32 %v419
        %vm441 = vweird.f32 %v435
        %vm442 = vmor %vm440, %vm441
        %v443 = vsel %vm442, %v435, %v439
        %v444 = vand.u32 2147483647, %v419
        %vm445 = vcmp.eq.f32.partialorder %v444, 8.507059e+37
        %v446 = vand.u32 %v419, 2147483648
        %v447 = vor.u32 1.1754944e-38, %v446
        %v448 = vsel %vm445, %v447, %v443
        %v449 = vmul.f32 1.0, %v448
        %v450 = vperm.slane %v356, 1
        %v451 = vmul.f32 %v450, %v434
        %v452 = vmul.f32 %v450, %v449
        %v453 = vadd.f32 %v404, %v451
        %v454 = vadd.f32 %v405, %v452
        %v455 = vperm.slane %v354, 2
        %v456 = vmul.f32 %v455, %v352
        %v457 = vmul.f32 %v455, %v353
        %v458 = vperm.slane %v355, 2
        %v459 = vadd.f32 %v456, %v458
        %v460 = vadd.f32 %v457, %v458
        %v461 = vxor.u32 %v459, 2147483648
        %v462 = vxor.u32 %v460, 2147483648
        %v463 = vmul.f32 %v461, 1.442695
        %v464 = vpow.pop %v463
        %v465 = vmul.f32 %v462, 1.442695
        %v466 = vpow.pop %v465
        %v467 = vadd.f32 %v464, 1.0
        %v468 = vadd.f32 %v466, 1.0
        %v469 = vrcp.pop %v467
        %v470 = vmul.f32 %v467, %v469
        %v471 = vsub.f32 1.0, %v470
        %v472 = vmul.f32 %v469, %v471
        %v473 = vadd.f32 %v469, %v472
        %vm474 = vweird.f32 %v467
        %vm475 = vweird.f32 %v469
        %vm476 = vmor %vm474, %vm475
        %v477 = vsel %vm476, %v469, %v473
        %v478 = vand.u32 2147483647, %v467
        %vm479 = vcmp.eq.f32.partialorder %v478, 8.507059e+37
        %v480 = vand.u32 %v467, 2147483648
        %v481 = vor.u32 1.1754944e-38, %v480
        %v482 = vsel %vm479, %v481, %v477
        %v483 = vmul.f32 1.0, %v482
        %v484 = vrcp.pop %v468
        %v485 = vmul.f32 %v468, %v484
        %v486 = vsub.f32 1.0, %v485
        %v487 = vmul.f32 %v484, %v486
        %v488 = vadd.f32 %v484, %v487
        %vm489 = vweird.f32 %v468
        %vm490 = vweird.f32 %v484
        %vm491 = vmor %vm489, %vm490
        %v492 = vsel %vm491, %v484, %v488
        %v493 = vand.u32 2147483647, %v468
        %vm494 = vcmp.eq.f32.partialorder %v493, 8.507059e+37
        %v495 = vand.u32 %v468, 2147483648
        %v496 = vor.u32 1.1754944e-38, %v495
        %v497 = vsel %vm494, %v496, %v492
        %v498 = vmul.f32 1.0, %v497
        %v499 = vperm.slane %v356, 2
        %v500 = vmul.f32 %v499, %v483
        %v501 = vmul.f32 %v499, %v498
        %v502 = vadd.f32 %v453, %v500
        %v503 = vadd.f32 %v454, %v501
        %v504 = vperm.slane %v354, 3
        %v505 = vmul.f32 %v504, %v352
        %v506 = vmul.f32 %v504, %v353
        %v507 = vperm.slane %v355, 3
        %v508 = vadd.f32 %v505, %v507
        %v509 = vadd.f32 %v506, %v507
        %v510 = vxor.u32 %v508, 2147483648
        %v511 = vxor.u32 %v509, 2147483648
        %v512 = vmul.f32 %v510, 1.442695
        %v513 = vpow.pop %v512
        %v514 = vmul.f32 %v511, 1.442695
        %v515 = vpow.pop %v514
        %v516 = vadd.f32 %v513, 1.0
        %v517 = vadd.f32 %v515, 1.0
        %v518 = vrcp.pop %v516
        %v519 = vmul.f32 %v516, %v518
        %v520 = vsub.f32 1.0, %v519
        %v521 = vmul.f32 %v518, %v520
        %v522 = vadd.f32 %v518, %v521
        %vm523 = vweird.f32 %v516
        %vm524 = vweird.f32 %v518
        %vm525 = vmor %vm523, %vm524
        %v526 = vsel %vm525, %v518, %v522
        %v527 = vand.u32 2147483647, %v516
        %vm528 = vcmp.eq.f32.partialorder %v527, 8.507059e+37
        %v529 = vand.u32 %v516, 2147483648
        %v530 = vor.u32 1.1754944e-38, %v529
        %v531 = vsel %vm528, %v530, %v526
        %v532 = vmul.f32 1.0, %v531
        %v533 = vrcp.pop %v517
        %v534 = vmul.f32 %v517, %v533
        %v535 = vsub.f32 1.0, %v534
        %v536 = vmul.f32 %v533, %v535
        %v537 = vadd.f32 %v533, %v536
        %vm538 = vweird.f32 %v517
        %vm539 = vweird.f32 %v533
        %vm540 = vmor %vm538, %vm539
        %v541 = vsel %vm540, %v533, %v537
        %v542 = vand.u32 2147483647, %v517
        %vm543 = vcmp.eq.f32.partialorder %v542, 8.507059e+37
        %v544 = vand.u32 %v517, 2147483648
        %v545 = vor.u32 1.1754944e-38, %v544
        %v546 = vsel %vm543, %v545, %v541
        %v547 = vmul.f32 1.0, %v546
        %v548 = vperm.slane %v356, 3
        %v549 = vmul.f32 %v548, %v532
        %v550 = vmul.f32 %v548, %v547
        %v551 = vadd.f32 %v502, %v549
        %v552 = vadd.f32 %v503, %v550
        %v553 = vperm.slane %v354, 4
        %v554 = vmul.f32 %v553, %v352
        %v555 = vmul.f32 %v553, %v353
        %v556 = vperm.slane %v355, 4
        %v557 = vadd.f32 %v554, %v556
        %v558 = vadd.f32 %v555, %v556
        %v559 = vxor.u32 %v557, 2147483648
        %v560 = vxor.u32 %v558, 2147483648
        %v561 = vmul.f32 %v559, 1.442695
        %v562 = vpow.pop %v561
        %v563 = vmul.f32 %v560, 1.442695
        %v564 = vpow.pop %v563
        %v565 = vadd.f32 %v562, 1.0
        %v566 = vadd.f32 %v564, 1.0
        %v567 = vrcp.pop %v565
        %v568 = vmul.f32 %v565, %v567
        %v569 = vsub.f32 1.0, %v568
        %v570 = vmul.f32 %v567, %v569
        %v571 = vadd.f32 %v567, %v570
        %vm572 = vweird.f32 %v565
        %vm573 = vweird.f32 %v567
        %vm574 = vmor %vm572, %vm573
        %v575 = vsel %vm574, %v567, %v571
        %v576 = vand.u32 2147483647, %v565
        %vm577 = vcmp.eq.f32.partialorder %v576, 8.507059e+37
        %v578 = vand.u32 %v565, 2147483648
        %v579 = vor.u32 1.1754944e-38, %v578
        %v580 = vsel %vm577, %v579, %v575
        %v581 = vmul.f32 1.0, %v580
        %v582 = vrcp.pop %v566
        %v583 = vmul.f32 %v566, %v582
        %v584 = vsub.f32 1.0, %v583
        %v585 = vmul.f32 %v582, %v584
        %v586 = vadd.f32 %v582, %v585
        %vm587 = vweird.f32 %v566
        %vm588 = vweird.f32 %v582
        %vm589 = vmor %vm587, %vm588
        %v590 = vsel %vm589, %v582, %v586
        %v591 = vand.u32 2147483647, %v566
        %vm592 = vcmp.eq.f32.partialorder %v591, 8.507059e+37
        %v593 = vand.u32 %v566, 2147483648
        %v594 = vor.u32 1.1754944e-38, %v593
        %v595 = vsel %vm592, %v594, %v590
        %v596 = vmul.f32 1.0, %v595
        %v597 = vperm.slane %v356, 4
        %v598 = vmul.f32 %v597, %v581
        %v599 = vmul.f32 %v597, %v596
        %v600 = vadd.f32 %v551, %v598
        %v601 = vadd.f32 %v552, %v599
        %v602 = vperm.slane %v354, 5
        %v603 = vmul.f32 %v602, %v352
        %v604 = vmul.f32 %v602, %v353
        %v605 = vperm.slane %v355, 5
        %v606 = vadd.f32 %v603, %v605
        %v607 = vadd.f32 %v604, %v605
        %v608 = vxor.u32 %v606, 2147483648
        %v609 = vxor.u32 %v607, 2147483648
        %v610 = vmul.f32 %v608, 1.442695
        %v611 = vpow.pop %v610
        %v612 = vmul.f32 %v609, 1.442695
        %v613 = vpow.pop %v612
        %v614 = vadd.f32 %v611, 1.0
        %v615 = vadd.f32 %v613, 1.0
        %v616 = vrcp.pop %v614
        %v617 = vmul.f32 %v614, %v616
        %v618 = vsub.f32 1.0, %v617
        %v619 = vmul.f32 %v616, %v618
        %v620 = vadd.f32 %v616, %v619
        %vm621 = vweird.f32 %v614
        %vm622 = vweird.f32 %v616
        %vm623 = vmor %vm621, %vm622
        %v624 = vsel %vm623, %v616, %v620
        %v625 = vand.u32 2147483647, %v614
        %vm626 = vcmp.eq.f32.partialorder %v625, 8.507059e+37
        %v627 = vand.u32 %v614, 2147483648
        %v628 = vor.u32 1.1754944e-38, %v627
        %v629 = vsel %vm626, %v628, %v624
        %v630 = vmul.f32 1.0, %v629
        %v631 = vrcp.pop %v615
        %v632 = vmul.f32 %v615, %v631
        %v633 = vsub.f32 1.0, %v632
        %v634 = vmul.f32 %v631, %v633
        %v635 = vadd.f32 %v631, %v634
        %vm636 = vweird.f32 %v615
        %vm637 = vweird.f32 %v631
        %vm638 = vmor %vm636, %vm637
        %v639 = vsel %vm638, %v631, %v635
        %v640 = vand.u32 2147483647, %v615
        %vm641 = vcmp.eq.f32.partialorder %v640, 8.507059e+37
        %v642 = vand.u32 %v615, 2147483648
        %v643 = vor.u32 1.1754944e-38, %v642
        %v644 = vsel %vm641, %v643, %v639
        %v645 = vmul.f32 1.0, %v644
        %v646 = vperm.slane %v356, 5
        %v647 = vmul.f32 %v646, %v630
        %v648 = vmul.f32 %v646, %v645
        %v649 = vadd.f32 %v600, %v647
        %v650 = vadd.f32 %v601, %v648
        %v651 = vperm.slane %v354, 6
        %v652 = vmul.f32 %v651, %v352
        %v653 = vmul.f32 %v651, %v353
        %v654 = vperm.slane %v355, 6
        %v655 = vadd.f32 %v652, %v654
        %v656 = vadd.f32 %v653, %v654
        %v657 = vxor.u32 %v655, 2147483648
        %v658 = vxor.u32 %v656, 2147483648
        %v659 = vmul.f32 %v657, 1.442695
        %v660 = vpow.pop %v659
        %v661 = vmul.f32 %v658, 1.442695
        %v662 = vpow.pop %v661
        %v663 = vadd.f32 %v660, 1.0
        %v664 = vadd.f32 %v662, 1.0
        %v665 = vrcp.pop %v663
        %v666 = vmul.f32 %v663, %v665
        %v667 = vsub.f32 1.0, %v666
        %v668 = vmul.f32 %v665, %v667
        %v669 = vadd.f32 %v665, %v668
        %vm670 = vweird.f32 %v663
        %vm671 = vweird.f32 %v665
        %vm672 = vmor %vm670, %vm671
        %v673 = vsel %vm672, %v665, %v669
        %v674 = vand.u32 2147483647, %v663
        %vm675 = vcmp.eq.f32.partialorder %v674, 8.507059e+37
        %v676 = vand.u32 %v663, 2147483648
        %v677 = vor.u32 1.1754944e-38, %v676
        %v678 = vsel %vm675, %v677, %v673
        %v679 = vmul.f32 1.0, %v678
        %v680 = vrcp.pop %v664
        %v681 = vmul.f32 %v664, %v680
        %v682 = vsub.f32 1.0, %v681
        %v683 = vmul.f32 %v680, %v682
        %v684 = vadd.f32 %v680, %v683
        %vm685 = vweird.f32 %v664
        %vm686 = vweird.f32 %v680
        %vm687 = vmor %vm685, %vm686
        %v688 = vsel %vm687, %v680, %v684
        %v689 = vand.u32 2147483647, %v664
        %vm690 = vcmp.eq.f32.partialorder %v689, 8.507059e+37
        %v691 = vand.u32 %v664, 2147483648
        %v692 = vor.u32 1.1754944e-38, %v691
        %v693 = vsel %vm690, %v692, %v688
        %v694 = vmul.f32 1.0, %v693
        %v695 = vperm.slane %v356, 6
        %v696 = vmul.f32 %v695, %v679
        %v697 = vmul.f32 %v695, %v694
        %v698 = vadd.f32 %v649, %v696
        %v699 = vadd.f32 %v650, %v697
        %v700 = vperm.slane %v354, 7
        %v701 = vmul.f32 %v700, %v352
        %v702 = vmul.f32 %v700, %v353
        %v703 = vperm.slane %v355, 7
        %v704 = vadd.f32 %v701, %v703
        %v705 = vadd.f32 %v702, %v703
        %v706 = vxor.u32 %v704, 2147483648
        %v707 = vxor.u32 %v705, 2147483648
        %v708 = vmul.f32 %v706, 1.442695
        %v709 = vpow.pop %v708
        %v710 = vmul.f32 %v707, 1.442695
        %v711 = vpow.pop %v710
        %v712 = vadd.f32 %v709, 1.0
        %v713 = vadd.f32 %v711, 1.0
        %v714 = vrcp.pop %v712
        %v715 = vmul.f32 %v712, %v714
        %v716 = vsub.f32 1.0, %v715
        %v717 = vmul.f32 %v714, %v716
        %v718 = vadd.f32 %v714, %v717
        %vm719 = vweird.f32 %v712
        %vm720 = vweird.f32 %v714
        %vm721 = vmor %vm719, %vm720
        %v722 = vsel %vm721, %v714, %v718
        %v723 = vand.u32 2147483647, %v712
        %vm724 = vcmp.eq.f32.partialorder %v723, 8.507059e+37
        %v725 = vand.u32 %v712, 2147483648
        %v726 = vor.u32 1.1754944e-38, %v725
        %v727 = vsel %vm724, %v726, %v722
        %v728 = vmul.f32 1.0, %v727
        %v729 = vrcp.pop %v713
        %v730 = vmul.f32 %v713, %v729
        %v731 = vsub.f32 1.0, %v730
        %v732 = vmul.f32 %v729, %v731
        %v733 = vadd.f32 %v729, %v732
        %vm734 = vweird.f32 %v713
        %vm735 = vweird.f32 %v729
        %vm736 = vmor %vm734, %vm735
        %v737 = vsel %vm736, %v729, %v733
        %v738 = vand.u32 2147483647, %v713
        %vm739 = vcmp.eq.f32.partialorder %v738, 8.507059e+37
        %v740 = vand.u32 %v713, 2147483648
        %v741 = vor.u32 1.1754944e-38, %v740
        %v742 = vsel %vm739, %v741, %v737
        %v743 = vmul.f32 1.0, %v742
        %v744 = vperm.slane %v356, 7
        %v745 = vmul.f32 %v744, %v728
        %v746 = vmul.f32 %v744, %v743
        %v747 = vadd.f32 %v698, %v745
        %v748 = vadd.f32 %v699, %v746
        %v749 = vpack.c.bf16 %v747, %v747
        %v750 = vpack.c.bf16 %v748, %v748
        %751 = vst [vmem:[%s349] sm:$0xf] %v749
        %752 = vst [vmem:[%s349 + $0x4] sm:$0xf] %v750
        %s753 = sand.u32 %s155, 1
        %s754 = scalar_lea.sflag [#allocation4], %s753
        %s755 = sand.u32 %s155, 1
        %s756 = smul.addr %s755, 8
        %s757 = scalar_lea.vmem [#allocation10], %s756
        // Predicated region
        $region53: #{tpu_custom_call.1} parent=35 // pred_check
          %p758 = pneg %p165
        $region54: #{tpu_custom_call.1} parent=35 // pred_check_branch
          %760 = sbr.rel (%p758) target = $region56
        $region55: #{tpu_custom_call.1} parent=35 // pred_region
          %s761 = smul.u32 2, %s31
          %763 = vsyncadd %s754, 0
          %s764 = smul.addr %s761, 2
          %s765 = sadd.s32 %s32, %s764
          %s766 = smul.addr %s765, 4
          %s767 = scalar_lea.hbm %s4, %s766
          %s768 = sshll.u32 %s757, 4
          %s769 = int_to_ptr.vmem [resolvable:$true] %s768
          %s770 = sshll.u32 %s767, 4
          %s771 = int_to_ptr.hbm [resolvable:$true] %s770
          %776 = dma.vmem_to_hbm [thread:$0]  %s769, 128, %s771, %s754, 64, 128, 4
        $region56: #{tpu_custom_call.1} parent=35 // pred_fallthru
          _
      $region36: #{tpu_custom_call.1} parent=5 // pred_fallthru
        _
      %p777 = scmp.le.s32.totalorder 2, %s22
      // Predicated region
      $region57: #{tpu_custom_call.1} parent=5 // pred_check
        %p778 = pneg %p777
      $region58: #{tpu_custom_call.1} parent=5 // pred_check_branch
        %780 = sbr.rel (%p778) target = $region60
      $region59: #{tpu_custom_call.1} parent=5 // pred_region
        %s781 = ssub.s32 %s22, 2
        // Predicated region
        $region61: #{tpu_custom_call.1} parent=59 // pred_check
          %p782 = pneg %p171
        $region62: #{tpu_custom_call.1} parent=59 // pred_check_branch
          %784 = sbr.rel (%p782) target = $region64
        $region63: #{tpu_custom_call.1} parent=59 // pred_region
          %s785 = sand.u32 %s156, 1
          %s786 = scalar_lea.sflag [#allocation4], %s785
          %s787 = sand.u32 %s156, 1
          %s788 = smul.addr %s787, 8
          %s789 = scalar_lea.vmem [#allocation10], %s788
          %791 = dma.done %s786, 128
        $region64: #{tpu_custom_call.1} parent=59 // pred_fallthru
          _
      $region60: #{tpu_custom_call.1} parent=5 // pred_fallthru
        _
    $region6: #{tpu_custom_call.1} parent=1 // loop_footer
      %s26 = sadd.s32 1, %s22
    $region7: #{tpu_custom_call.1} parent=1 // loop_footer_branch
      %21 = sbr.rel target = $region3
    $region8: #{tpu_custom_call.1} parent=1 // loop_exit
      _
    %792 = vsyncpa [#allocation3], 1
    %s793 = scalar_lea.sflag [#allocation3], 1
    %794 = vsyncpa %s793, 1
    %795 = vsyncpa [#allocation6], 1
    %s796 = scalar_lea.sflag [#allocation6], 1
    %797 = vsyncpa %s796, 1
    %798 = vsyncpa [#allocation9], 1
    %s799 = scalar_lea.sflag [#allocation9], 1
    %800 = vsyncpa %s799, 1
    %801 = vsyncpa [#allocation4], 1
    %s802 = scalar_lea.sflag [#allocation4], 1
    %803 = vsyncpa %s802, 1

</llo_original>
